<compile_context>
chip_gen: v6e
topology: v6e:2x2x1
jax: 0.10.0
libtpu: 0.0.40
codegen_flags: <defaults>
</compile_context>

<pallas_src>
import functools

import jax
import jax.numpy as jnp
from jax.experimental import pallas as pl
from jax.experimental.pallas import tpu as pltpu


def _lse_sign_kernel(logits_ref, x_ref, y_ref, inv_w_ref, out_ref, acc_ref,
                     *, batch, tb, bpc, needs_mask):
    c = pl.program_id(0)   # core slice
    i = pl.program_id(1)   # batch-block step within the core slice

    @pl.when(i == 0)
    def _():
        acc_ref[...] = jnp.zeros_like(acc_ref)

    logits = logits_ref[...].astype(jnp.float32)      # [tb, C]
    x = x_ref[...].astype(jnp.float32)                # [tb, D]
    y = y_ref[...].astype(jnp.float32)                # [tb, C]
    inv_w = inv_w_ref[...]                            # [1, C] f32, eta folded in

    # rsqrt on the EUP; no [tb, C] denominator materialized.
    xn2 = jnp.sum(x * x, axis=1, keepdims=True)       # [tb, 1]
    inv_x = jax.lax.rsqrt(xn2)                        # [tb, 1]

    s = (logits * inv_x) * inv_w                      # [tb, C]
    e = jnp.exp(-s * y)                               # [tb, C]

    if needs_mask:
        # Unclamped global start row of this step (the BlockSpec clamps the
        # actual DMA, so out-of-range steps re-read the last block; those rows
        # are >= batch here and get fully masked away).
        first_row = (c * bpc + i) * tb

        @pl.when(first_row + tb <= batch)
        def _():  # full, valid tile: no masking work
            acc_ref[...] += jnp.sum(e, axis=0, keepdims=True)

        @pl.when(first_row + tb > batch)
        def _():  # partial or duplicated tile: select (handles NaN from padding)
            row = first_row + jax.lax.broadcasted_iota(jnp.int32, e.shape, 0)
            acc_ref[...] += jnp.sum(jnp.where(row < batch, e, 0.0),
                                    axis=0, keepdims=True)
    else:
        acc_ref[...] += jnp.sum(e, axis=0, keepdims=True)

    @pl.when(i == pl.num_programs(1) - 1)
    def _():
        # One cross-lane reduce per core slice; partial sum to SMEM output.
        out_ref[0, 0] = jnp.sum(acc_ref[...])


def lse_sign_loss(logits, x, w, y, eta=1.0, block_b=8192, num_cores=2):
    """logits [B,C], x [B,D], w [C,D], y [B,C] -> scalar float32 loss."""
    B, C = logits.shape
    D = x.shape[1]
    assert w.shape == (C, D) and y.shape == (B, C)

    # eta / ||w||_row as a resident, lane-aligned [1, C] row (rsqrt + eta hoisted
    # out of the kernel; also removes any [C,D]/[D,C] DMA and transpose).
    w32 = w.astype(jnp.float32)
    inv_w = (jnp.float32(eta) * jax.lax.rsqrt(jnp.sum(w32 * w32, axis=1)))[None, :]

    # Batch tile: full B when small, otherwise block_b (multiple of 8).
    # With C=40 / D=32 lane-padded to 128, each stream is 512 B/row in VMEM, so
    # the double-buffered working set is ~3*tb KiB (~24 MiB at tb=8192) -- fits
    # the v7x 32 MiB scoped default, needs vmem_limit_bytes raised on v5e.
    if B <= block_b:
        tb = B
    else:
        assert block_b % 8 == 0, "block_b must be a multiple of 8"
        tb = min(block_b, 8192)          # cap: keep well under v7x 64 MiB VMEM

    nb = pl.cdiv(B, tb)                  # total batch blocks
    nc = max(1, min(num_cores, nb))      # core slices ("parallel" axis)
    bpc = pl.cdiv(nb, nc)                # blocks per core slice
    # Mask needed if the last block is partial or a core slice has a padded
    # (clamped, duplicated) step.
    needs_mask = (B % tb != 0) or (nb % nc != 0)

    def batch_map(c, i):
        blk = c * bpc + i
        if needs_mask:
            blk = jnp.minimum(blk, nb - 1)   # keep the DMA in bounds
        return (blk, 0)

    kernel = functools.partial(_lse_sign_kernel, batch=B, tb=tb, bpc=bpc,
                               needs_mask=needs_mask)

    # 3 batch streams, double-buffered, last dim lane-padded to 128 lanes.
    vmem_limit = max(3 * 2 * tb * 128 * 4 + (2 << 20), 32 * 1024 * 1024)

    partials = pl.pallas_call(
        kernel,
        out_shape=jax.ShapeDtypeStruct((nc, 1), jnp.float32),
        grid=(nc, bpc),
        in_specs=[
            pl.BlockSpec((tb, C), batch_map),              # logits
            pl.BlockSpec((tb, D), batch_map),              # x
            pl.BlockSpec((tb, C), batch_map),              # y
            pl.BlockSpec((1, C), lambda c, i: (0, 0)),     # inv_w (resident)
        ],
        out_specs=pl.BlockSpec((1, 1), lambda c, i: (c, 0),
                               memory_space=pltpu.MemorySpace.SMEM),
        scratch_shapes=[pltpu.VMEM((1, C), jnp.float32)],  # vector accumulator
        compiler_params=pltpu.CompilerParams(
            dimension_semantics=("parallel", "arbitrary"),
            vmem_limit_bytes=int(vmem_limit)),
    )(logits, x, y, inv_w)

    return jnp.log1p(jnp.sum(partials)) / jnp.float32(B)


def _reference(logits, x, w, y, eta=1.0):
    x_norm = jnp.linalg.norm(x, axis=1)[:, None]       # [B,1]
    w_norm = jnp.linalg.norm(w, axis=1)[None, :]       # [1,C]
    s = eta * logits / (x_norm * w_norm)
    return jnp.log(1.0 + jnp.sum(jnp.exp(-s * y))) / logits.shape[0]


if __name__ == "__main__":
    key = jax.random.PRNGKey(0)
    k1, k2, k3, k4 = jax.random.split(key, 4)

    # C=40 is hard-coded in the PyTorch module.
    B, C, D = 8, 40, 32
    logits = jax.random.normal(k1, (B, C), dtype=jnp.float32)
    x = jax.random.normal(k2, (B, D), dtype=jnp.float32)
    w = jax.random.normal(k3, (C, D), dtype=jnp.float32)
    y = jnp.sign(jax.random.normal(k4, (B, C), dtype=jnp.float32))

    loss = jax.block_until_ready(lse_sign_loss(logits, x, w, y, eta=1.0))
    ref = _reference(logits, x, w, y, eta=1.0)
    assert jnp.allclose(loss, ref, rtol=1e-5, atol=1e-5), (loss, ref)

    # Gridded path: partial last tile, clamped duplicate step, 2-slice split,
    # eta != 1 (B=20, tile=8 -> 3 blocks over a (2,2) grid).
    B2 = 20
    k5, k6, k7, k8 = jax.random.split(jax.random.PRNGKey(1), 4)
    logits2 = jax.random.normal(k5, (B2, C), dtype=jnp.float32)
    x2 = jax.random.normal(k6, (B2, D), dtype=jnp.float32)
    w2 = jax.random.normal(k7, (C, D), dtype=jnp.float32)
    y2 = jnp.sign(jax.random.normal(k8, (B2, C), dtype=jnp.float32))

    loss2 = jax.block_until_ready(
        lse_sign_loss(logits2, x2, w2, y2, eta=0.5, block_b=8))
    ref2 = _reference(logits2, x2, w2, y2, eta=0.5)
    assert jnp.allclose(loss2, ref2, rtol=1e-5, atol=1e-5), (loss2, ref2)

    # Gridded path: even split, no masking (B=32, tile=8 -> 4 blocks, (2,2) grid).
    B3 = 32
    k9, k10, k11, k12 = jax.random.split(jax.random.PRNGKey(2), 4)
    logits3 = jax.random.normal(k9, (B3, C), dtype=jnp.float32)
    x3 = jax.random.normal(k10, (B3, D), dtype=jnp.float32)
    w3 = jax.random.normal(k11, (C, D), dtype=jnp.float32)
    y3 = jnp.sign(jax.random.normal(k12, (B3, C), dtype=jnp.float32))

    loss3 = jax.block_until_ready(
        lse_sign_loss(logits3, x3, w3, y3, eta=1.0, block_b=8))
    ref3 = _reference(logits3, x3, w3, y3, eta=1.0)
    assert jnp.allclose(loss3, ref3, rtol=1e-5, atol=1e-5), (loss3, ref3)

    print("KERNEL_OK")
</pallas_src>

<mosaic_0001>
module attributes {stable_mosaic.version = 11 : i64} {
  func.func @_lse_sign_kernel(%arg0: i32, %arg1: i32, %arg2: memref<8x40xf32, #tpu.memory_space<vmem>>, %arg3: memref<8x32xf32, #tpu.memory_space<vmem>>, %arg4: memref<8x40xf32, #tpu.memory_space<vmem>>, %arg5: memref<1x40xf32, #tpu.memory_space<vmem>>, %arg6: memref<1x1xf32, #tpu.memory_space<smem>>, %arg7: memref<1x40xf32, #tpu.memory_space<vmem>>) attributes {dimension_semantics = [#tpu.dimension_semantics<parallel>, #tpu.dimension_semantics<arbitrary>], iteration_bounds = array<i64: 1, 1>, scalar_prefetch = 0 : i64, scratch_operands = 1 : i64, tpu.core_type = #tpu.core_type<tc>, window_params = [{transform_indices = @transform_0, window_bounds = array<i64: 8, 40>}, {transform_indices = @transform_1, window_bounds = array<i64: 8, 32>}, {transform_indices = @transform_2, window_bounds = array<i64: 8, 40>}, {pipeline_mode = #tpu.pipeline_mode<synchronous>, transform_indices = @transform_3, window_bounds = array<i64: 1, 40>}, {transform_indices = @transform_4, window_bounds = array<i64: 1, 1>}]} {
    %c0_i32 = arith.constant 0 : i32
    %0 = arith.cmpi eq, %arg1, %c0_i32 : i32
    %1 = arith.extui %0 : i1 to i32
    %c0_i32_0 = arith.constant 0 : i32
    %2 = arith.cmpi ne, %1, %c0_i32_0 : i32
    scf.if %2 {
      %cst_16 = arith.constant 0.000000e+00 : f32
      %27 = vector.broadcast %cst_16 : f32 to vector<1x40xf32>
      %c0_17 = arith.constant 0 : index
      %c0_18 = arith.constant 0 : index
      %28 = vector.load %arg7[%c0_17, %c0_18] : memref<1x40xf32, #tpu.memory_space<vmem>>, vector<1x40xf32>
      tpu.vector_store %arg7[%c0_17, %c0_18], %27 {strides = array<i32>} : memref<1x40xf32, #tpu.memory_space<vmem>>, vector<1x40xf32>,
    } else {
    }
    %c0 = arith.constant 0 : index
    %c0_1 = arith.constant 0 : index
    %3 = vector.load %arg2[%c0, %c0_1] : memref<8x40xf32, #tpu.memory_space<vmem>>, vector<8x40xf32>
    %c0_2 = arith.constant 0 : index
    %c0_3 = arith.constant 0 : index
    %4 = vector.load %arg3[%c0_2, %c0_3] : memref<8x32xf32, #tpu.memory_space<vmem>>, vector<8x32xf32>
    %c0_4 = arith.constant 0 : index
    %c0_5 = arith.constant 0 : index
    %5 = vector.load %arg4[%c0_4, %c0_5] : memref<8x40xf32, #tpu.memory_space<vmem>>, vector<8x40xf32>
    %c0_6 = arith.constant 0 : index
    %c0_7 = arith.constant 0 : index
    %6 = vector.load %arg5[%c0_6, %c0_7] : memref<1x40xf32, #tpu.memory_space<vmem>>, vector<1x40xf32>
    %7 = arith.mulf %4, %4 : vector<8x32xf32>
    %cst = arith.constant dense<0.000000e+00> : vector<8xf32>
    %8 = vector.multi_reduction <add>, %7, %cst [1] : vector<8x32xf32> to vector<8xf32>
    %9 = vector.shape_cast %8 : vector<8xf32> to vector<8x1xf32>
    %10 = math.rsqrt %9 : vector<8x1xf32>
    %11 = vector.broadcast %10 : vector<8x1xf32> to vector<8x40xf32>
    %12 = arith.mulf %3, %11 : vector<8x40xf32>
    %13 = vector.broadcast %6 : vector<1x40xf32> to vector<8x40xf32>
    %14 = arith.mulf %12, %13 : vector<8x40xf32>
    %cst_8 = arith.constant 0.000000e+00 : f32
    %15 = vector.broadcast %cst_8 : f32 to vector<8x40xf32>
    %16 = arith.subf %15, %14 : vector<8x40xf32>
    %17 = arith.mulf %16, %5 : vector<8x40xf32>
    %18 = math.exp %17 : vector<8x40xf32>
    %c0_9 = arith.constant 0 : index
    %c0_10 = arith.constant 0 : index
    %19 = vector.load %arg7[%c0_9, %c0_10] : memref<1x40xf32, #tpu.memory_space<vmem>>, vector<1x40xf32>
    %cst_11 = arith.constant dense<0.000000e+00> : vector<40xf32>
    %20 = vector.multi_reduction <add>, %18, %cst_11 [0] : vector<8x40xf32> to vector<40xf32>
    %21 = vector.shape_cast %20 : vector<40xf32> to vector<1x40xf32>
    %22 = arith.addf %19, %21 : vector<1x40xf32>
    %c0_12 = arith.constant 0 : index
    %c0_13 = arith.constant 0 : index
    %23 = vector.load %arg7[%c0_12, %c0_13] : memref<1x40xf32, #tpu.memory_space<vmem>>, vector<1x40xf32>
    tpu.vector_store %arg7[%c0_12, %c0_13], %22 {strides = array<i32>} : memref<1x40xf32, #tpu.memory_space<vmem>>, vector<1x40xf32>,
    %c0_i32_14 = arith.constant 0 : i32
    %24 = arith.cmpi eq, %arg1, %c0_i32_14 : i32
    %25 = arith.extui %24 : i1 to i32
    %c0_i32_15 = arith.constant 0 : i32
    %26 = arith.cmpi ne, %25, %c0_i32_15 : i32
    scf.if %26 {
      %c0_16 = arith.constant 0 : index
      %c0_17 = arith.constant 0 : index
      %27 = vector.load %arg7[%c0_16, %c0_17] : memref<1x40xf32, #tpu.memory_space<vmem>>, vector<1x40xf32>
      %28 = vector.shape_cast %27 : vector<1x40xf32> to vector<1x1x40xf32>
      %cst_18 = arith.constant dense<0.000000e+00> : vector<1xf32>
      %29 = vector.multi_reduction <add>, %28, %cst_18 [1, 2] : vector<1x1x40xf32> to vector<1xf32>
      %30 = vector.shape_cast %29 : vector<1xf32> to vector<1x1x1xf32>
      %31 = vector.extract %30[0, 0, 0] : f32 from vector<1x1x1xf32>
      %c0_19 = arith.constant 0 : index
      %c0_20 = arith.constant 0 : index
      %32 = memref.load %arg6[%c0_19, %c0_20] : memref<1x1xf32, #tpu.memory_space<smem>>
      memref.store %31, %arg6[%c0_19, %c0_20] : memref<1x1xf32, #tpu.memory_space<smem>>
    } else {
    }
    return
  }
  func.func @transform_0(%arg0: i32, %arg1: i32) -> (i32, i32) {
    %c1_i32 = arith.constant 1 : i32
    %0 = arith.muli %arg0, %c1_i32 : i32
    %1 = arith.addi %0, %arg1 : i32
    %c0_i32 = arith.constant 0 : i32
    %c0_i32_0 = arith.constant 0 : i32
    return %1, %c0_i32 : i32, i32
  }
  func.func @transform_1(%arg0: i32, %arg1: i32) -> (i32, i32) {
    %c1_i32 = arith.constant 1 : i32
    %0 = arith.muli %arg0, %c1_i32 : i32
    %1 = arith.addi %0, %arg1 : i32
    %c0_i32 = arith.constant 0 : i32
    %c0_i32_0 = arith.constant 0 : i32
    return %1, %c0_i32 : i32, i32
  }
  func.func @transform_2(%arg0: i32, %arg1: i32) -> (i32, i32) {
    %c1_i32 = arith.constant 1 : i32
    %0 = arith.muli %arg0, %c1_i32 : i32
    %1 = arith.addi %0, %arg1 : i32
    %c0_i32 = arith.constant 0 : i32
    %c0_i32_0 = arith.constant 0 : i32
    return %1, %c0_i32 : i32, i32
  }
  func.func @transform_3(%arg0: i32, %arg1: i32) -> (i32, i32) {
    %c0_i32 = arith.constant 0 : i32
    %c0_i32_0 = arith.constant 0 : i32
    %c0_i32_1 = arith.constant 0 : i32
    return %c0_i32, %c0_i32_0 : i32, i32
  }
  func.func @transform_4(%arg0: i32, %arg1: i32) -> (i32, i32) {
    %c0_i32 = arith.constant 0 : i32
    %c0_i32_0 = arith.constant 0 : i32
    return %arg0, %c0_i32 : i32, i32
  }
}

</mosaic_0001>

<llo_original>
// kernel: tpu_custom_call.1
$region0: #{tpu_custom_call.1}
  #allocation0 [shape = 'u32[]', space=smem, size = 0x4, offset = 0x4, fixed_abs, tag = 'smem constant byte address 0x4 - core index']
  #allocation1 [shape = 'u32[144,128]{1,0:T(1,128)}', space=vmem, size = 0x12000, scoped, tag = 'internal scratch']
  #allocation2 [shape = 'f32[1,40]{1,0:T(1,128)}', space=vmem, size = 0x200, scoped, tag = 'scratch operand']
  %s0 = inlined_call_operand.hbm [shape: f32[8,40], index: 0, kind: input, shape index: {}]
  %s1 = inlined_call_operand.hbm [shape: f32[8,32], index: 1, kind: input, shape index: {}]
  %s2 = inlined_call_operand.hbm [shape: f32[8,40], index: 2, kind: input, shape index: {}]
  %s3 = inlined_call_operand.vmem [shape: f32[1,40], index: 3, kind: input, shape index: {}]
  %s4 = inlined_call_operand.hbm [shape: f32[1,1], index: 4, kind: output, shape index: {}]
  %s5 = sld [smem:[#allocation0]]
  $region46: #{tpu_custom_call.1} parent=0
    _
  %s7 = ssub.s32 1, %s5
  %s8 = scalar_select 0, %s7, %s5
  $region1: #{tpu_custom_call.1} parent=0
    #allocation3 [shape = 'u8[4096]{0}', space=vmem, size = 0x1000, scoped, tag = 'input window, operand 0, single buffered']
    #allocation4 [shape = 's32[1]{0}', space=sflag, size = 0x4, scoped, tag = 'scoped memory for tpu_custom_call.1']
    #allocation5 [shape = 's32[1]{0}', space=sflag, size = 0x4, scoped, tag = 'scoped memory for tpu_custom_call.1']
    #allocation6 [shape = 'u8[4096]{0}', space=vmem, size = 0x1000, scoped, tag = 'input window, operand 1, single buffered']
    #allocation7 [shape = 's32[1]{0}', space=sflag, size = 0x4, scoped, tag = 'scoped memory for tpu_custom_call.1']
    #allocation8 [shape = 'u8[4096]{0}', space=vmem, size = 0x1000, scoped, tag = 'input window, operand 2, single buffered']
    #allocation9 [shape = 'u8[512]{0}', space=smem, size = 0x200, scoped, tag = 'output window, operand 0, single buffered']
    %9 = vsyncpa [#allocation4], 0
    %10 = vsyncpa [#allocation7], 0
    %11 = vsyncpa [#allocation5], 0
    // Predicated region
    $region2: #{tpu_custom_call.1} parent=1 // pred_check
      _
    $region3: #{tpu_custom_call.1} parent=1 // pred_check_branch
      %13 = sbr.rel (0) target = $region5
    $region4: #{tpu_custom_call.1} parent=1 // pred_region
      %s14 = sadd.s32 0, 0
      %s16 = ssub.s32 128, 128
      %17 = vsyncadd [#allocation4], %s16
      %s18 = smul.addr %s14, 128
      %s19 = scalar_lea.hbm %s0, %s18
      %s21 = sshll.u32 [#allocation3], 4
      %s22 = int_to_ptr.vmem [resolvable:$true] %s21
      %24 = dma.hbm_to_vmem [thread:$0]  %s19, 128, %s22, [#allocation4]
    $region5: #{tpu_custom_call.1} parent=1 // pred_fallthru
      _
    // Predicated region
    $region6: #{tpu_custom_call.1} parent=1 // pred_check
      _
    $region7: #{tpu_custom_call.1} parent=1 // pred_check_branch
      %26 = sbr.rel (0) target = $region9
    $region8: #{tpu_custom_call.1} parent=1 // pred_region
      %s27 = sadd.s32 0, 0
      %s29 = ssub.s32 128, 128
      %30 = vsyncadd [#allocation7], %s29
      %s31 = smul.addr %s27, 128
      %s32 = scalar_lea.hbm %s1, %s31
      %s34 = sshll.u32 [#allocation6], 4
      %s35 = int_to_ptr.vmem [resolvable:$true] %s34
      %37 = dma.hbm_to_vmem [thread:$0]  %s32, 128, %s35, [#allocation7]
    $region9: #{tpu_custom_call.1} parent=1 // pred_fallthru
      _
    // Predicated region
    $region10: #{tpu_custom_call.1} parent=1 // pred_check
      _
    $region11: #{tpu_custom_call.1} parent=1 // pred_check_branch
      %39 = sbr.rel (0) target = $region13
    $region12: #{tpu_custom_call.1} parent=1 // pred_region
      %s40 = sadd.s32 0, 0
      %s42 = ssub.s32 128, 128
      %43 = vsyncadd [#allocation7], %s42
      %s44 = smul.addr %s40, 128
      %s45 = scalar_lea.hbm %s2, %s44
      %s47 = sshll.u32 [#allocation8], 4
      %s48 = int_to_ptr.vmem [resolvable:$true] %s47
      %50 = dma.hbm_to_vmem [thread:$0]  %s45, 128, %s48, [#allocation7]
    $region13: #{tpu_custom_call.1} parent=1 // pred_fallthru
      _
    // Predicated region
    $region14: #{tpu_custom_call.1} parent=1 // pred_check
      _
    $region15: #{tpu_custom_call.1} parent=1 // pred_check_branch
      %52 = sbr.rel (0) target = $region17
    $region16: #{tpu_custom_call.1} parent=1 // pred_region
      _
    $region17: #{tpu_custom_call.1} parent=1 // pred_fallthru
      _
    // Predicated region
    $region18: #{tpu_custom_call.1} parent=1 // pred_check
      _
    $region19: #{tpu_custom_call.1} parent=1 // pred_check_branch
      %54 = sbr.rel (0) target = $region21
    $region20: #{tpu_custom_call.1} parent=1 // pred_region
      %55 = dma.done [#allocation4], 128
    $region21: #{tpu_custom_call.1} parent=1 // pred_fallthru
      _
    // Predicated region
    $region22: #{tpu_custom_call.1} parent=1 // pred_check
      _
    $region23: #{tpu_custom_call.1} parent=1 // pred_check_branch
      %57 = sbr.rel (0) target = $region25
    $region24: #{tpu_custom_call.1} parent=1 // pred_region
      %58 = dma.done [#allocation7], 128
    $region25: #{tpu_custom_call.1} parent=1 // pred_fallthru
      _
    // Predicated region
    $region26: #{tpu_custom_call.1} parent=1 // pred_check
      _
    $region27: #{tpu_custom_call.1} parent=1 // pred_check_branch
      %60 = sbr.rel (0) target = $region29
    $region28: #{tpu_custom_call.1} parent=1 // pred_region
      %61 = dma.done [#allocation7], 128
    $region29: #{tpu_custom_call.1} parent=1 // pred_fallthru
      _
    %s62 = sadd.s32 0, 0
    %s63 = sadd.s32 0, 0
    %s64 = sadd.s32 0, 0
    %p65 = scmp.eq.s32.totalorder 0, 0
    // Predicated region
    $region30: #{tpu_custom_call.1} parent=1 // pred_check
      %p66 = pneg %p65
    $region31: #{tpu_custom_call.1} parent=1 // pred_check_branch
      %68 = sbr.rel (%p66) target = $region33
    $region32: #{tpu_custom_call.1} parent=1 // pred_region
      %vm69 = vcmask 319488
      %70 = vst.msk [vmem:[#allocation2] sm:$0x1] %vm69, 0.0
    $region33: #{tpu_custom_call.1} parent=1 // pred_fallthru
      _
    %v71 = vld [vmem:[#allocation3] sm:$0xff]
    %v72 = vld [vmem:[#allocation6] sm:$0xff]
    %v73 = vld [vmem:[#allocation8] sm:$0xff]
    %v74 = vld [vmem:[%s3] sm:$0x1]
    %v75 = vmul.f32 %v72, %v72
    %vm76 = vcmask 261120
    %v77 = vsel %vm76, %v75, 0.0
    %78 = vadd.xlane.f32.xlu0 %v77
    %v79 = vpop.xlane.xlu0 %78
    %v80 = vrsqrt.pop %v79
    %v81 = vmul.f32 %v71, %v80
    %v83 = vlaneseq
    %v84 = vshrl.u32 %v83, 7
    %v85 = vsub.s32 0, %v84
    %v86 = vrot.slane %v74, %v85
    %v88 = vmul.f32 %v81, %v86
    %v89 = vsub.f32 0.0, %v88
    %v90 = vmul.f32 %v89, %v73
    %v91 = vmul.f32 %v90, 1.442695
    %v92 = vpow.pop %v91
    %v93 = vld [vmem:[#allocation2] sm:$0x1]
    %vm94 = vcmask 326656
    %v95 = vsel %vm94, %v92, 0.0
    %v96 = vrot.slane %v95, 4
    %v97 = vadd.f32 %v95, %v96
    %v98 = vrot.slane %v97, 2
    %v99 = vadd.f32 %v97, %v98
    %v100 = vrot.slane %v99, 1
    %v101 = vadd.f32 %v99, %v100
    %v102 = vadd.f32 %v93, %v101
    %vm103 = vcmask 319488
    %104 = vst.msk [vmem:[#allocation2] sm:$0x1] %vm103, %v102
    // Predicated region
    $region34: #{tpu_custom_call.1} parent=1 // pred_check
      %p105 = pneg %p65
    $region35: #{tpu_custom_call.1} parent=1 // pred_check_branch
      %107 = sbr.rel (%p105) target = $region37
    $region36: #{tpu_custom_call.1} parent=1 // pred_region
      %v108 = vld [vmem:[#allocation2] sm:$0x1]
      %v109 = vsel %vm103, %v108, 0.0
      %110 = vadd.xlane.f32.xlu0 %v109
      %v111 = vpop.xlane.xlu0 %110
      %v112 = vrot.slane %v111, 4
      %v113 = vadd.f32 %v111, %v112
      %v114 = vrot.slane %v113, 2
      %v115 = vadd.f32 %v113, %v114
      %v116 = vrot.slane %v115, 1
      %v117 = vadd.f32 %v115, %v116
      %s118 = vtos %v117
      %s119 = scalar_lea.smem [#allocation9], 0
      %120 = sst [smem:[%s119]] %s118
    $region37: #{tpu_custom_call.1} parent=1 // pred_fallthru
      _
    // Predicated region
    $region38: #{tpu_custom_call.1} parent=1 // pred_check
      _
    $region39: #{tpu_custom_call.1} parent=1 // pred_check_branch
      %122 = sbr.rel (0) target = $region41
    $region40: #{tpu_custom_call.1} parent=1 // pred_region
      %s124 = ssub.s32 16, 16
      %125 = vsyncadd [#allocation5], %s124
      %128 = dma.smem_to_hbm [#allocation9], 16, %s4, [#allocation5]
    $region41: #{tpu_custom_call.1} parent=1 // pred_fallthru
      _
    // Predicated region
    $region42: #{tpu_custom_call.1} parent=1 // pred_check
      _
    $region43: #{tpu_custom_call.1} parent=1 // pred_check_branch
      %130 = sbr.rel (0) target = $region45
    $region44: #{tpu_custom_call.1} parent=1 // pred_region
      %131 = dma.done [#allocation5], 16
    $region45: #{tpu_custom_call.1} parent=1 // pred_fallthru
      _
    %132 = sfence
    %133 = vsyncpa [#allocation4], 1
    %134 = vsyncpa [#allocation7], 1
    %135 = vsyncpa [#allocation5], 1

</llo_original>
